<compile_context>
chip_gen: v7x
topology: tpu7x:2x2x1
jax: 0.10.0
libtpu: 0.0.40
codegen_flags: <defaults>
</compile_context>

<pallas_src>
import functools

import jax
import jax.numpy as jnp
from jax.experimental import pallas as pl
from jax.experimental.pallas import tpu as pltpu

# ----- "env" parameters (deterministic, synthetic) -----
ENV_T = 10.0
ENV_MAX_U = 2.0
ENV_SIGMA = 0.1
NORM_INV = 1.0 / (ENV_T * (ENV_MAX_U / 2.0))

# ----- model hyperparameters -----
INPUT_SIZE = 4
HIDDEN_SIZE = 32
N_LAYERS = 3                 # => N_LAYERS - 1 = 2 inner hidden layers
N_HIDDEN = N_LAYERS - 1
OUTPUT_SIZE = 1

# ----- demo batching -----
BATCH = 128                  # rows fed per call (sublane-aligned)
TILE_B = 64                  # rows per grid step (grid=(2,) -> both v7x TCs usable)

# ----- packed-parameter row layout (last dim = HIDDEN_SIZE lanes) -----
ROW_W1 = 0                                   # rows 0..3   : W1 (normalization folded in)
ROW_B1 = INPUT_SIZE                          # row  4      : b1
ROW_WN = ROW_B1 + 1                          # row  5      : WN.T (as a row)
ROW_BN = ROW_WN + 1                          # row  6      : bN (value in lane 0 only)
ROW_WH = 8                                   # rows 8..71  : stacked hidden weights (8-aligned)
ROW_BH = ROW_WH + N_HIDDEN * HIDDEN_SIZE     # rows 72..73 : hidden biases
PACK_ROWS = ((ROW_BH + N_HIDDEN + 7) // 8) * 8   # pad to multiple of 8 -> 80


def policy_mlp_kernel(x_ref, p_ref, loc_ref):
    x = x_ref[...]                               # (TILE_B, INPUT_SIZE)
    p = p_ref[...]                               # (PACK_ROWS, HIDDEN_SIZE)

    # layer1 + SiLU (normalization already folded into row 0 of W1)
    w1 = p[ROW_W1:ROW_W1 + INPUT_SIZE, :]
    b1 = p[ROW_B1:ROW_B1 + 1, :]
    h = jnp.dot(x, w1, preferred_element_type=jnp.float32) + b1
    h = h * pl.reciprocal(1.0 + jnp.exp(-h), approx=True)

    # hidden layers + SiLU (static unroll over the stacked weights)
    for i in range(N_HIDDEN):
        w = p[ROW_WH + i * HIDDEN_SIZE: ROW_WH + (i + 1) * HIDDEN_SIZE, :]
        b = p[ROW_BH + i: ROW_BH + i + 1, :]
        z = jnp.dot(h, w, preferred_element_type=jnp.float32) + b
        h = z * pl.reciprocal(1.0 + jnp.exp(-z), approx=True)

    # output layer (32 -> 1) as mul + row-reduce; bias recovered by reducing its row
    wn_row = p[ROW_WN:ROW_WN + 1, :]             # (1, HIDDEN)
    bn = jnp.sum(p[ROW_BN:ROW_BN + 1, :], axis=-1, keepdims=True)   # (1, 1), exact
    out = jnp.sum(h * wn_row, axis=-1, keepdims=True) + bn
    loc_ref[...] = jnp.clip(out, -ENV_MAX_U, ENV_MAX_U)


def pack_params(params):
    """One-time transform: fold normalization into W1 and pack every tensor into a
    single lane-dense (PACK_ROWS, HIDDEN_SIZE) f32 buffer."""
    w1, b1, wh, bh, wn, bn = params
    w1 = w1.at[0, :].multiply(NORM_INV)          # fold x[...,0] /= T*(max_u/2) into W1
    p = jnp.zeros((PACK_ROWS, HIDDEN_SIZE), jnp.float32)
    p = p.at[ROW_W1:ROW_W1 + INPUT_SIZE, :].set(w1)
    p = p.at[ROW_B1, :].set(b1.reshape(HIDDEN_SIZE))
    p = p.at[ROW_WN, :].set(wn.reshape(HIDDEN_SIZE))
    p = p.at[ROW_BN, 0].set(bn.reshape(()))
    for i in range(N_HIDDEN):
        p = p.at[ROW_WH + i * HIDDEN_SIZE: ROW_WH + (i + 1) * HIDDEN_SIZE, :].set(wh[i])
        p = p.at[ROW_BH + i, :].set(bh[i].reshape(HIDDEN_SIZE))
    return p


def policy_approx_forward(x, packed_params, *, tile_b=TILE_B):
    """Returns (loc, scale) exactly like PolicyApprox.forward."""
    b = x.shape[0]
    b_pad = max(tile_b, ((b + tile_b - 1) // tile_b) * tile_b)
    if b_pad != b:
        x = jnp.pad(x, ((0, b_pad - b), (0, 0)))
    grid = (b_pad // tile_b,)

    flops = 2 * b_pad * (INPUT_SIZE * HIDDEN_SIZE
                         + N_HIDDEN * HIDDEN_SIZE * HIDDEN_SIZE
                         + HIDDEN_SIZE)
    cost = pl.CostEstimate(
        flops=flops,
        transcendentals=N_LAYERS * b_pad * HIDDEN_SIZE,
        bytes_accessed=4 * (x.size + packed_params.size + b_pad * OUTPUT_SIZE),
    )

    loc = pl.pallas_call(
        policy_mlp_kernel,
        out_shape=jax.ShapeDtypeStruct((b_pad, OUTPUT_SIZE), jnp.float32),
        grid_spec=pltpu.PrefetchScalarGridSpec(
            num_scalar_prefetch=0,
            grid=grid,
            in_specs=[
                pl.BlockSpec((tile_b, INPUT_SIZE), lambda i: (i, 0)),
                # constant block index -> weights stay resident in VMEM across steps
                pl.BlockSpec((PACK_ROWS, HIDDEN_SIZE), lambda i: (0, 0)),
            ],
            out_specs=pl.BlockSpec((tile_b, OUTPUT_SIZE), lambda i: (i, 0)),
        ),
        compiler_params=pltpu.CompilerParams(
            dimension_semantics=("parallel",)),
        cost_estimate=cost,
    )(x, packed_params)
    return loc[:b], ENV_SIGMA


def init_params(key):
    """Deterministic init matching the PyTorch module:
       weights ~ N(0, (1/sqrt(input_size)/2)^2), biases = 0.
       Weights are stored pre-transposed: (in_features, out_features)."""
    std = 1.0 / jnp.sqrt(float(INPUT_SIZE)) / 2.0
    k1, k2, k3 = jax.random.split(key, 3)
    w1 = std * jax.random.normal(k1, (INPUT_SIZE, HIDDEN_SIZE), jnp.float32)
    b1 = jnp.zeros((1, HIDDEN_SIZE), jnp.float32)
    wh = std * jax.random.normal(k2, (N_HIDDEN, HIDDEN_SIZE, HIDDEN_SIZE),
                                 jnp.float32)
    bh = jnp.zeros((N_HIDDEN, 1, HIDDEN_SIZE), jnp.float32)
    wn = std * jax.random.normal(k3, (HIDDEN_SIZE, OUTPUT_SIZE), jnp.float32)
    bn = jnp.zeros((1, OUTPUT_SIZE), jnp.float32)
    return w1, b1, wh, bh, wn, bn


def reference_forward(x, params):
    """Pure-JAX reference (uses the un-folded, un-packed params)."""
    w1, b1, wh, bh, wn, bn = params
    x = x.at[..., 0].multiply(NORM_INV)
    h = jax.nn.silu(x @ w1 + b1)
    for i in range(N_HIDDEN):
        h = jax.nn.silu(h @ wh[i] + bh[i])
    loc = jnp.clip(h @ wn + bn, -ENV_MAX_U, ENV_MAX_U)
    return loc, ENV_SIGMA


if __name__ == "__main__":
    key = jax.random.PRNGKey(0)
    kx, kp = jax.random.split(key)
    x = jax.random.normal(kx, (BATCH, INPUT_SIZE), jnp.float32)
    params = init_params(kp)
    packed = pack_params(params)

    loc, scale = policy_approx_forward(x, packed)
    loc = jax.block_until_ready(loc)

    loc_ref, _ = reference_forward(x, params)
    assert loc.shape == (BATCH, OUTPUT_SIZE)
    # approx (EUP) reciprocal in the sigmoid -> slightly looser tolerance
    assert jnp.allclose(loc, loc_ref, atol=5e-3, rtol=5e-3), \
        float(jnp.max(jnp.abs(loc - loc_ref)))
    assert scale == ENV_SIGMA

    print("KERNEL_OK")
</pallas_src>

<mosaic_0001>
module attributes {stable_mosaic.version = 11 : i64} {
  func.func @policy_mlp_kernel(%arg0: i32, %arg1: memref<64x4xf32, #tpu.memory_space<vmem>>, %arg2: memref<80x32xf32, #tpu.memory_space<vmem>>, %arg3: memref<64x1xf32, #tpu.memory_space<vmem>>) attributes {dimension_semantics = [#tpu.dimension_semantics<parallel>], iteration_bounds = array<i64: 2>, scalar_prefetch = 0 : i64, scratch_operands = 0 : i64, tpu.core_type = #tpu.core_type<tc>, window_params = [{transform_indices = @transform_0, window_bounds = array<i64: 64, 4>}, {pipeline_mode = #tpu.pipeline_mode<synchronous>, transform_indices = @transform_1, window_bounds = array<i64: 80, 32>}, {transform_indices = @transform_2, window_bounds = array<i64: 64, 1>}]} {
    %c0 = arith.constant 0 : index
    %c0_0 = arith.constant 0 : index
    %0 = vector.load %arg1[%c0, %c0_0] : memref<64x4xf32, #tpu.memory_space<vmem>>, vector<64x4xf32>
    %c0_1 = arith.constant 0 : index
    %c0_2 = arith.constant 0 : index
    %1 = vector.load %arg2[%c0_1, %c0_2] : memref<80x32xf32, #tpu.memory_space<vmem>>, vector<80x32xf32>
    %2 = vector.extract_strided_slice %1 {offsets = [0, 0], sizes = [4, 32], strides = [1, 1]} : vector<80x32xf32> to vector<4x32xf32>
    %3 = vector.extract_strided_slice %1 {offsets = [4, 0], sizes = [1, 32], strides = [1, 1]} : vector<80x32xf32> to vector<1x32xf32>
    %cst = arith.constant dense<0.000000e+00> : vector<64x32xf32>
    %4 = tpu.matmul %0, %2, %cst {dimension_numbers = #tpu.dot_dimension_numbers<[1], [0], [0], [1], [0, 0, 1, 1], [], []>} : vector<64x4xf32>, vector<4x32xf32>, vector<64x32xf32> -> vector<64x32xf32>
    %5 = vector.broadcast %3 : vector<1x32xf32> to vector<64x32xf32>
    %6 = arith.addf %4, %5 : vector<64x32xf32>
    %cst_3 = arith.constant 0.000000e+00 : f32
    %7 = vector.broadcast %cst_3 : f32 to vector<64x32xf32>
    %8 = arith.subf %7, %6 : vector<64x32xf32>
    %9 = math.exp %8 : vector<64x32xf32>
    %cst_4 = arith.constant 1.000000e+00 : f32
    %10 = vector.broadcast %cst_4 : f32 to vector<64x32xf32>
    %11 = arith.addf %10, %9 : vector<64x32xf32>
    %12 = tpu.reciprocal %11 {approx = true} : vector<64x32xf32> -> vector<64x32xf32>
    %13 = arith.mulf %6, %12 : vector<64x32xf32>
    %14 = vector.extract_strided_slice %1 {offsets = [8, 0], sizes = [32, 32], strides = [1, 1]} : vector<80x32xf32> to vector<32x32xf32>
    %15 = vector.extract_strided_slice %1 {offsets = [72, 0], sizes = [1, 32], strides = [1, 1]} : vector<80x32xf32> to vector<1x32xf32>
    %cst_5 = arith.constant dense<0.000000e+00> : vector<64x32xf32>
    %16 = tpu.matmul %13, %14, %cst_5 {dimension_numbers = #tpu.dot_dimension_numbers<[1], [0], [0], [1], [0, 0, 1, 1], [], []>} : vector<64x32xf32>, vector<32x32xf32>, vector<64x32xf32> -> vector<64x32xf32>
    %17 = vector.broadcast %15 : vector<1x32xf32> to vector<64x32xf32>
    %18 = arith.addf %16, %17 : vector<64x32xf32>
    %cst_6 = arith.constant 0.000000e+00 : f32
    %19 = vector.broadcast %cst_6 : f32 to vector<64x32xf32>
    %20 = arith.subf %19, %18 : vector<64x32xf32>
    %21 = math.exp %20 : vector<64x32xf32>
    %cst_7 = arith.constant 1.000000e+00 : f32
    %22 = vector.broadcast %cst_7 : f32 to vector<64x32xf32>
    %23 = arith.addf %22, %21 : vector<64x32xf32>
    %24 = tpu.reciprocal %23 {approx = true} : vector<64x32xf32> -> vector<64x32xf32>
    %25 = arith.mulf %18, %24 : vector<64x32xf32>
    %26 = vector.extract_strided_slice %1 {offsets = [40, 0], sizes = [32, 32], strides = [1, 1]} : vector<80x32xf32> to vector<32x32xf32>
    %27 = vector.extract_strided_slice %1 {offsets = [73, 0], sizes = [1, 32], strides = [1, 1]} : vector<80x32xf32> to vector<1x32xf32>
    %cst_8 = arith.constant dense<0.000000e+00> : vector<64x32xf32>
    %28 = tpu.matmul %25, %26, %cst_8 {dimension_numbers = #tpu.dot_dimension_numbers<[1], [0], [0], [1], [0, 0, 1, 1], [], []>} : vector<64x32xf32>, vector<32x32xf32>, vector<64x32xf32> -> vector<64x32xf32>
    %29 = vector.broadcast %27 : vector<1x32xf32> to vector<64x32xf32>
    %30 = arith.addf %28, %29 : vector<64x32xf32>
    %cst_9 = arith.constant 0.000000e+00 : f32
    %31 = vector.broadcast %cst_9 : f32 to vector<64x32xf32>
    %32 = arith.subf %31, %30 : vector<64x32xf32>
    %33 = math.exp %32 : vector<64x32xf32>
    %cst_10 = arith.constant 1.000000e+00 : f32
    %34 = vector.broadcast %cst_10 : f32 to vector<64x32xf32>
    %35 = arith.addf %34, %33 : vector<64x32xf32>
    %36 = tpu.reciprocal %35 {approx = true} : vector<64x32xf32> -> vector<64x32xf32>
    %37 = arith.mulf %30, %36 : vector<64x32xf32>
    %38 = vector.extract_strided_slice %1 {offsets = [5, 0], sizes = [1, 32], strides = [1, 1]} : vector<80x32xf32> to vector<1x32xf32>
    %39 = vector.extract_strided_slice %1 {offsets = [6, 0], sizes = [1, 32], strides = [1, 1]} : vector<80x32xf32> to vector<1x32xf32>
    %cst_11 = arith.constant dense<0.000000e+00> : vector<1xf32>
    %40 = vector.multi_reduction <add>, %39, %cst_11 [1] : vector<1x32xf32> to vector<1xf32>
    %41 = vector.shape_cast %40 : vector<1xf32> to vector<1x1xf32>
    %42 = vector.broadcast %38 : vector<1x32xf32> to vector<64x32xf32>
    %43 = arith.mulf %37, %42 : vector<64x32xf32>
    %cst_12 = arith.constant dense<0.000000e+00> : vector<64xf32>
    %44 = vector.multi_reduction <add>, %43, %cst_12 [1] : vector<64x32xf32> to vector<64xf32>
    %45 = vector.shape_cast %44 : vector<64xf32> to vector<64x1xf32>
    %46 = vector.broadcast %41 : vector<1x1xf32> to vector<64x1xf32>
    %47 = arith.addf %45, %46 : vector<64x1xf32>
    %cst_13 = arith.constant -2.000000e+00 : f32
    %cst_14 = arith.constant 2.000000e+00 : f32
    %48 = vector.broadcast %cst_13 : f32 to vector<64x1xf32>
    %49 = arith.maximumf %48, %47 : vector<64x1xf32>
    %50 = vector.broadcast %cst_14 : f32 to vector<64x1xf32>
    %51 = arith.minimumf %50, %49 : vector<64x1xf32>
    %c0_15 = arith.constant 0 : index
    %c0_16 = arith.constant 0 : index
    %52 = vector.load %arg3[%c0_15, %c0_16] : memref<64x1xf32, #tpu.memory_space<vmem>>, vector<64x1xf32>
    tpu.vector_store %arg3[%c0_15, %c0_16], %51 {strides = array<i32>} : memref<64x1xf32, #tpu.memory_space<vmem>>, vector<64x1xf32>,
    return
  }
  func.func @transform_0(%arg0: i32) -> (i32, i32) {
    %c0_i32 = arith.constant 0 : i32
    %c0_i32_0 = arith.constant 0 : i32
    return %arg0, %c0_i32 : i32, i32
  }
  func.func @transform_1(%arg0: i32) -> (i32, i32) {
    %c0_i32 = arith.constant 0 : i32
    %c0_i32_0 = arith.constant 0 : i32
    %c0_i32_1 = arith.constant 0 : i32
    return %c0_i32, %c0_i32_0 : i32, i32
  }
  func.func @transform_2(%arg0: i32) -> (i32, i32) {
    %c0_i32 = arith.constant 0 : i32
    %c0_i32_0 = arith.constant 0 : i32
    return %arg0, %c0_i32 : i32, i32
  }
}

</mosaic_0001>

<llo_original>
// kernel: tpu_custom_call.1
$region0: #{tpu_custom_call.1}
  #allocation0 [shape = 'u32[]', space=smem, size = 0x4, offset = 0x4, fixed_abs, tag = 'smem constant byte address 0x4 - core index']
  #allocation1 [shape = 'u32[144,128]{1,0:T(1,128)}', space=vmem, size = 0x12000, scoped, tag = 'internal scratch']
  %s0 = inlined_call_operand.vmem [shape: f32[128,4], index: 0, kind: input, shape index: {}]
  %s1 = inlined_call_operand.vmem [shape: f32[80,32], index: 1, kind: input, shape index: {}]
  %s2 = inlined_call_operand.vmem [shape: f32[128,1], index: 2, kind: output, shape index: {}]
  %s3 = sld [smem:[#allocation0]]
  $region41: #{tpu_custom_call.1} parent=0
    _
  %s5 = ssub.s32 1, %s3
  %s6 = scalar_select 0, %s5, %s3
  loop: start=0, step=1, limit=4
  $region2: #{tpu_custom_call.1} parent=0 // loop_pre_header
    _
  $region3: #{tpu_custom_call.1} parent=0 // loop_header
    %s8 = sphi 0, %s12
    %p9 = scmp.ge.s32.totalorder %s8, 4
    %s18 = sphi 0, %s20
    %s21 = sphi 0, %s18
    %s22 = sphi 0, %s21
    %s38 = sphi 0, %s22
    %s42 = sphi 0, %s42
    %s44 = sphi 0, %s42
    %s45 = sphi 0, %s44
    %s59 = sphi 0, %s45
    %s65 = sphi 0, %s67
    %s68 = sphi 0, %s65
    %s69 = sphi 0, %s68
    %s85 = sphi 0, %s69
  $region4: #{tpu_custom_call.1} parent=0 // loop_header_branch
    %11 = sbr.rel (%p9) target = $region8
  $region5: #{tpu_custom_call.1} parent=0 // loop_body
    %s13 = ssub.s32 %s8, 1
    %s14 = ssub.s32 %s8, 2
    %s15 = sadd.s32 %s8, 1
    %s16 = ssub.s32 %s8, %s15
    %p17 = scmp.eq.s32.totalorder %s16, 0
    %s19 = sadd.s32 %s18, 1
    %s20 = scalar_select %p17, %s18, %s19
    %p23 = pneg %p17
    %p24 = scmp.eq.s32.totalorder %s8, 1
    %p25 = por %p23, %p24
    %p26 = scmp.ne.s32.totalorder %s18, %s21
    %p27 = scmp.eq.s32.totalorder %s8, 0
    %p28 = por %p26, %p27
    %p29 = scmp.ne.s32.totalorder %s18, %s21
    %p30 = scmp.eq.s32.totalorder %s13, 1
    %p31 = por %p29, %p30
    %p32 = scmp.ne.s32.totalorder %s21, %s22
    %p33 = scmp.eq.s32.totalorder %s13, 0
    %p34 = por %p32, %p33
    %p35 = scmp.ne.s32.totalorder %s21, %s22
    %p36 = scmp.eq.s32.totalorder %s14, 1
    %p37 = por %p35, %p36
    %p39 = scmp.ne.s32.totalorder %s22, %s38
    %p40 = scmp.eq.s32.totalorder %s14, 0
    %p41 = por %p39, %p40
    %s43 = sadd.s32 %s42, 1
    %p46 = scmp.eq.s32.totalorder %s8, 1
    %p47 = scmp.ne.s32.totalorder %s42, %s44
    %p48 = scmp.eq.s32.totalorder %s8, 0
    %p49 = por %p47, %p48
    %p50 = scmp.ne.s32.totalorder %s42, %s44
    %p51 = scmp.eq.s32.totalorder %s13, 1
    %p52 = por %p50, %p51
    %p53 = scmp.ne.s32.totalorder %s44, %s45
    %p54 = scmp.eq.s32.totalorder %s13, 0
    %p55 = por %p53, %p54
    %p56 = scmp.ne.s32.totalorder %s44, %s45
    %p57 = scmp.eq.s32.totalorder %s14, 1
    %p58 = por %p56, %p57
    %p60 = scmp.ne.s32.totalorder %s45, %s59
    %p61 = scmp.eq.s32.totalorder %s14, 0
    %p62 = por %p60, %p61
    %s63 = ssub.s32 %s8, %s15
    %p64 = scmp.eq.s32.totalorder %s63, 0
    %s66 = sadd.s32 %s65, 1
    %s67 = scalar_select %p64, %s65, %s66
    %p70 = pneg %p64
    %p71 = scmp.eq.s32.totalorder %s8, 1
    %p72 = por %p70, %p71
    %p73 = scmp.ne.s32.totalorder %s65, %s68
    %p74 = scmp.eq.s32.totalorder %s8, 0
    %p75 = por %p73, %p74
    %p76 = scmp.ne.s32.totalorder %s65, %s68
    %p77 = scmp.eq.s32.totalorder %s13, 1
    %p78 = por %p76, %p77
    %p79 = scmp.ne.s32.totalorder %s68, %s69
    %p80 = scmp.eq.s32.totalorder %s13, 0
    %p81 = por %p79, %p80
    %p82 = scmp.ne.s32.totalorder %s68, %s69
    %p83 = scmp.eq.s32.totalorder %s14, 1
    %p84 = por %p82, %p83
    %p86 = scmp.ne.s32.totalorder %s69, %s85
    %p87 = scmp.eq.s32.totalorder %s14, 0
    %p88 = por %p86, %p87
    %p89 = scmp.le.s32.totalorder 1, %s8
    %p90 = scmp.lt.s32.totalorder %s8, 3
    %p91 = pnand %p89, %p90
    %p92 = pneg %p91
    // Predicated region
    $region9: #{tpu_custom_call.1} parent=5 // pred_check
      _
    $region10: #{tpu_custom_call.1} parent=5 // pred_check_branch
      %94 = sbr.rel (%p91) target = $region12
    $region11: #{tpu_custom_call.1} parent=5 // pred_region
      %s95 = ssub.s32 %s8, 1
      // Predicated region
      $region13: #{tpu_custom_call.1} parent=11 // pred_check
        %p96 = pneg %p55
      $region14: #{tpu_custom_call.1} parent=11 // pred_check_branch
        %98 = sbr.rel (%p96) target = $region16
      $region15: #{tpu_custom_call.1} parent=11 // pred_region
        _
      $region16: #{tpu_custom_call.1} parent=11 // pred_fallthru
        _
    $region12: #{tpu_custom_call.1} parent=5 // pred_fallthru
      _
    %p99 = scmp.lt.s32.totalorder %s8, 2
    // Predicated region
    $region17: #{tpu_custom_call.1} parent=5 // pred_check
      %p100 = pneg %p99
    $region18: #{tpu_custom_call.1} parent=5 // pred_check_branch
      %102 = sbr.rel (%p100) target = $region20
    $region19: #{tpu_custom_call.1} parent=5 // pred_region
      // Predicated region
      $region21: #{tpu_custom_call.1} parent=19 // pred_check
        %p103 = pneg %p28
      $region22: #{tpu_custom_call.1} parent=19 // pred_check_branch
        %105 = sbr.rel (%p103) target = $region24
      $region23: #{tpu_custom_call.1} parent=19 // pred_region
        %s106 = smul.u32 8, %s8
        %p107 = scmp.lt.s32.totalorder %s106, 15
        %s108 = scalar_select %p107, %s106, 15
        %s109 = smul.addr %s108, 8
        %s110 = scalar_lea.vmem %s0, %s109
        %s111 = smul.u32 8, %s8
      $region24: #{tpu_custom_call.1} parent=19 // pred_fallthru
        _
    $region20: #{tpu_custom_call.1} parent=5 // pred_fallthru
      _
    %p112 = scmp.le.s32.totalorder 1, %s8
    %p113 = scmp.lt.s32.totalorder %s8, 3
    %p114 = pnand %p112, %p113
    %p115 = pneg %p114
    // Predicated region
    $region25: #{tpu_custom_call.1} parent=5 // pred_check
      _
    $region26: #{tpu_custom_call.1} parent=5 // pred_check_branch
      %117 = sbr.rel (%p114) target = $region28
    $region27: #{tpu_custom_call.1} parent=5 // pred_region
      %s118 = ssub.s32 %s8, 1
      %s119 = smul.u32 8, %s13
      %p120 = scmp.lt.s32.totalorder %s119, 15
      %s121 = scalar_select %p120, %s119, 15
      %s122 = smul.addr %s121, 8
      %s123 = scalar_lea.vmem %s0, %s122
      %p124 = pneg %p34
      %p125 = pneg %p31
      %p126 = pneg %p55
      %p127 = pneg %p52
      %p128 = pneg %p81
      %p129 = pneg %p78
      %s130 = smul.u32 8, %s13
      %p131 = scmp.lt.s32.totalorder %s130, 15
      %s132 = scalar_select %p131, %s130, 15
      %s133 = smul.addr %s132, 8
      %s134 = scalar_lea.vmem %s2, %s133
      %s135 = smul.u32 8, %s13
      %p136 = scmp.lt.s32.totalorder %s135, 15
      %s137 = scalar_select %p136, %s135, 15
      %s138 = smul.addr %s137, 8
      %s139 = scalar_lea.vmem %s0, %s138
      %s140 = smul.u32 8, %s13
      %s141 = smul.u32 8, %s13
      %p142 = scmp.lt.s32.totalorder %s141, 15
      %s143 = scalar_select %p142, %s141, 15
      %s144 = smul.addr %s143, 8
      %s145 = scalar_lea.vmem %s2, %s144
      %s146 = smul.u32 8, %s13
      %v147 = vld [vmem:[%s139] sm:$0xff]
      %v148 = vld [vmem:[%s139 + $0x8] sm:$0xff]
      %v149 = vld [vmem:[%s139 + $0x10] sm:$0xff]
      %v150 = vld [vmem:[%s139 + $0x18] sm:$0xff]
      %v151 = vld [vmem:[%s139 + $0x20] sm:$0xff]
      %v152 = vld [vmem:[%s139 + $0x28] sm:$0xff]
      %v153 = vld [vmem:[%s139 + $0x30] sm:$0xff]
      %v154 = vld [vmem:[%s139 + $0x38] sm:$0xff]
      %v155 = vld [vmem:[%s1] sm:$0xff]
      %v156 = vld [vmem:[%s1 + $0x8] sm:$0xff]
      %v157 = vld [vmem:[%s1 + $0x10] sm:$0xff]
      %v158 = vld [vmem:[%s1 + $0x18] sm:$0xff]
      %v159 = vld [vmem:[%s1 + $0x20] sm:$0xff]
      %v160 = vld [vmem:[%s1 + $0x28] sm:$0xff]
      %v161 = vld [vmem:[%s1 + $0x30] sm:$0xff]
      %v162 = vld [vmem:[%s1 + $0x38] sm:$0xff]
      %v163 = vld [vmem:[%s1 + $0x40] sm:$0xff]
      %v164 = vld [vmem:[%s1 + $0x48] sm:$0xff]
      %v165 = vlaneseq
      %v166 = vshrl.u32 %v165, 7
      %v167 = vsub.s32 4, %v166
      %v168 = vrot.slane %v155, %v167
      %vm169 = vcmask 31744
      %v171 = vsel %vm169, %v147, 0
      %v174 = vsel %vm169, %v148, 0
      %v177 = vsel %vm169, %v149, 0
      %v180 = vsel %vm169, %v150, 0
      %v183 = vsel %vm169, %v151, 0
      %v186 = vsel %vm169, %v152, 0
      %v189 = vsel %vm169, %v153, 0
      %v192 = vsel %vm169, %v154, 0
      %vm194 = vcmask 1043456
      %v196 = vsel %vm194, %v155, 0
      %198 = vmatprep.subr.mxu0 0.0
      %199 = vmatpush1.msra.mxu0 %v196
      %200 = vmatprep.subr.mxu0 0.0
      %201 = vmatpush1.msra.mxu0 0.0
      %202 = vmatprep.subr.mxu0 0.0
      %203 = vmatpush1.msra.mxu0 0.0
      %204 = vmatprep.subr.mxu0 0.0
      %205 = vmatpush1.msra.mxu0 0.0
      %206 = vmatprep.subr.mxu0 0.0
      %207 = vmatpush1.msra.mxu0 0.0
      %208 = vmatprep.subr.mxu0 0.0
      %209 = vmatpush1.msra.mxu0 0.0
      %210 = vmatprep.subr.mxu0 0.0
      %211 = vmatpush1.msra.mxu0 0.0
      %212 = vmatprep.subr.mxu0 0.0
      %213 = vmatpush1.msra.mxu0 0.0
      %214 = vmatprep.subr.mxu0 0.0
      %215 = vmatpush1.msra.mxu0 0.0
      %216 = vmatprep.subr.mxu0 0.0
      %217 = vmatpush1.msra.mxu0 0.0
      %218 = vmatprep.subr.mxu0 0.0
      %219 = vmatpush1.msra.mxu0 0.0
      %220 = vmatprep.subr.mxu0 0.0
      %221 = vmatpush1.msra.mxu0 0.0
      %222 = vmatprep.subr.mxu0 0.0
      %223 = vmatpush1.msra.mxu0 0.0
      %224 = vmatprep.subr.mxu0 0.0
      %225 = vmatpush1.msra.mxu0 0.0
      %226 = vmatprep.subr.mxu0 0.0
      %227 = vmatpush1.msra.mxu0 0.0
      %228 = vmatprep.subr.mxu0 0.0
      %229 = vmatpush1.msra.mxu0 0.0
      %230 = vmatprep.subr.mxu0 0.0
      %231 = vmatpush1.msra.mxu0 0.0
      %232 = vmatprep.subr.mxu0 0.0
      %233 = vmatpush1.msra.mxu0 0.0
      %234 = vmatprep.subr.mxu0 0.0
      %235 = vmatpush1.msra.mxu0 0.0
      %236 = vmatprep.subr.mxu0 0.0
      %237 = vmatpush1.msra.mxu0 0.0
      %238 = vmatprep.subr.mxu0 0.0
      %239 = vmatpush1.msra.mxu0 0.0
      %240 = vmatprep.subr.mxu0 0.0
      %241 = vmatpush1.msra.mxu0 0.0
      %242 = vmatprep.subr.mxu0 0.0
      %243 = vmatpush1.msra.mxu0 0.0
      %244 = vmatprep.subr.mxu0 0.0
      %245 = vmatpush1.msra.mxu0 0.0
      %246 = vmatprep.subr.mxu0 0.0
      %247 = vmatpush1.msra.mxu0 0.0
      %248 = vmatprep.subr.mxu0 0.0
      %249 = vmatpush1.msra.mxu0 0.0
      %250 = vmatprep.subr.mxu0 0.0
      %251 = vmatpush1.msra.mxu0 0.0
      %252 = vmatprep.subr.mxu0 0.0
      %253 = vmatpush1.msra.mxu0 0.0
      %254 = vmatprep.subr.mxu0 0.0
      %255 = vmatpush1.msra.mxu0 0.0
      %256 = vmatprep.subr.mxu0 0.0
      %257 = vmatpush1.msra.mxu0 0.0
      %258 = vmatprep.subr.mxu0 0.0
      %259 = vmatpush1.msra.mxu0 0.0
      %260 = vmatprep.subr.mxu0 0.0
      %261 = vmatpush1.msra.mxu0 0.0
      %262 = vmatprep.mubr.f32.mxu0 0.0
      %263 = vmatmul.mubr.f32.gmra.mrb[0].mxu0 %v171
      %v264 = vpop.f32.mrb[0].mxu0
      %v265 = vadd.f32 %v168, %v264
      %v266 = vpop.f32.mrb[0].mxu0
      %267 = vmatprep.mubr.f32.mxu0 0.0
      %268 = vmatmul.mubr.f32.gmra.mrb[0].mxu0 %v174
      %v269 = vpop.f32.mrb[0].mxu0
      %v270 = vadd.f32 %v168, %v269
      %v271 = vpop.f32.mrb[0].mxu0
      %272 = vmatprep.mubr.f32.mxu0 0.0
      %273 = vmatmul.mubr.f32.gmra.mrb[0].mxu0 %v177
      %v274 = vpop.f32.mrb[0].mxu0
      %v275 = vadd.f32 %v168, %v274
      %v276 = vpop.f32.mrb[0].mxu0
      %277 = vmatprep.mubr.f32.mxu0 0.0
      %278 = vmatmul.mubr.f32.gmra.mrb[0].mxu0 %v180
      %v279 = vpop.f32.mrb[0].mxu0
      %v280 = vadd.f32 %v168, %v279
      %v281 = vpop.f32.mrb[0].mxu0
      %282 = vmatprep.mubr.f32.mxu0 0.0
      %283 = vmatmul.mubr.f32.gmra.mrb[0].mxu0 %v183
      %v284 = vpop.f32.mrb[0].mxu0
      %v285 = vadd.f32 %v168, %v284
      %v286 = vpop.f32.mrb[0].mxu0
      %287 = vmatprep.mubr.f32.mxu0 0.0
      %288 = vmatmul.mubr.f32.gmra.mrb[0].mxu0 %v186
      %v289 = vpop.f32.mrb[0].mxu0
      %v290 = vadd.f32 %v168, %v289
      %v291 = vpop.f32.mrb[0].mxu0
      %292 = vmatprep.mubr.f32.mxu0 0.0
      %293 = vmatmul.mubr.f32.gmra.mrb[0].mxu0 %v189
      %v294 = vpop.f32.mrb[0].mxu0
      %v295 = vadd.f32 %v168, %v294
      %v296 = vpop.f32.mrb[0].mxu0
      %297 = vmatprep.mubr.f32.mxu0 0.0
      %298 = vmatmul.mubr.f32.gmra.mrb[0].mxu0 %v192
      %v299 = vpop.f32.mrb[0].mxu0
      %v300 = vadd.f32 %v168, %v299
      %v301 = vpop.f32.mrb[0].mxu0
      %302 = vdwg.mxu0
      %v303 = vsub.f32 0.0, %v265
      %v304 = vsub.f32 0.0, %v270
      %v305 = vsub.f32 0.0, %v275
      %v306 = vsub.f32 0.0, %v280
      %v307 = vsub.f32 0.0, %v285
      %v308 = vsub.f32 0.0, %v290
      %v309 = vsub.f32 0.0, %v295
      %v310 = vsub.f32 0.0, %v300
      %v311 = vmul.f32 %v303, 1.442695
      %v312 = vpow.pop %v311
      %v313 = vmul.f32 %v304, 1.442695
      %v314 = vpow.pop %v313
      %v315 = vmul.f32 %v305, 1.442695
      %v316 = vpow.pop %v315
      %v317 = vmul.f32 %v306, 1.442695
      %v318 = vpow.pop %v317
      %v319 = vmul.f32 %v307, 1.442695
      %v320 = vpow.pop %v319
      %v321 = vmul.f32 %v308, 1.442695
      %v322 = vpow.pop %v321
      %v323 = vmul.f32 %v309, 1.442695
      %v324 = vpow.pop %v323
      %v325 = vmul.f32 %v310, 1.442695
      %v326 = vpow.pop %v325
      %v327 = vadd.f32 %v312, 1.0
      %v328 = vadd.f32 %v314, 1.0
      %v329 = vadd.f32 %v316, 1.0
      %v330 = vadd.f32 %v318, 1.0
      %v331 = vadd.f32 %v320, 1.0
      %v332 = vadd.f32 %v322, 1.0
      %v333 = vadd.f32 %v324, 1.0
      %v334 = vadd.f32 %v326, 1.0
      %v335 = vrcp.pop %v327
      %v336 = vrcp.pop %v328
      %v337 = vrcp.pop %v329
      %v338 = vrcp.pop %v330
      %v339 = vrcp.pop %v331
      %v340 = vrcp.pop %v332
      %v341 = vrcp.pop %v333
      %v342 = vrcp.pop %v334
      %v343 = vmul.f32 %v265, %v335
      %v344 = vmul.f32 %v270, %v336
      %v345 = vmul.f32 %v275, %v337
      %v346 = vmul.f32 %v280, %v338
      %v347 = vmul.f32 %v285, %v339
      %v348 = vmul.f32 %v290, %v340
      %v349 = vmul.f32 %v295, %v341
      %v350 = vmul.f32 %v300, %v342
      %v351 = vlaneseq
      %v352 = vshrl.u32 %v351, 7
      %v353 = vsub.s32 0, %v352
      %v354 = vrot.slane %v164, %v353
      %vm355 = vcmask 261120
      %v357 = vsel %vm355, %v343, 0
      %v360 = vsel %vm355, %v344, 0
      %v363 = vsel %vm355, %v345, 0
      %v366 = vsel %vm355, %v346, 0
      %v369 = vsel %vm355, %v347, 0
      %v372 = vsel %vm355, %v348, 0
      %v375 = vsel %vm355, %v349, 0
      %v378 = vsel %vm355, %v350, 0
      %380 = vmatprep.subr.mxu0 0.0
      %381 = vmatpush1.msra.mxu0 %v156
      %382 = vmatprep.subr.mxu0 0.0
      %383 = vmatpush1.msra.mxu0 %v157
      %384 = vmatprep.subr.mxu0 0.0
      %385 = vmatpush1.msra.mxu0 %v158
      %386 = vmatprep.subr.mxu0 0.0
      %387 = vmatpush1.msra.mxu0 %v159
      %388 = vmatprep.subr.mxu0 0.0
      %389 = vmatpush1.msra.mxu0 0.0
      %390 = vmatprep.subr.mxu0 0.0
      %391 = vmatpush1.msra.mxu0 0.0
      %392 = vmatprep.subr.mxu0 0.0
      %393 = vmatpush1.msra.mxu0 0.0
      %394 = vmatprep.subr.mxu0 0.0
      %395 = vmatpush1.msra.mxu0 0.0
      %396 = vmatprep.subr.mxu0 0.0
      %397 = vmatpush1.msra.mxu0 0.0
      %398 = vmatprep.subr.mxu0 0.0
      %399 = vmatpush1.msra.mxu0 0.0
      %400 = vmatprep.subr.mxu0 0.0
      %401 = vmatpush1.msra.mxu0 0.0
      %402 = vmatprep.subr.mxu0 0.0
      %403 = vmatpush1.msra.mxu0 0.0
      %404 = vmatprep.subr.mxu0 0.0
      %405 = vmatpush1.msra.mxu0 0.0
      %406 = vmatprep.subr.mxu0 0.0
      %407 = vmatpush1.msra.mxu0 0.0
      %408 = vmatprep.subr.mxu0 0.0
      %409 = vmatpush1.msra.mxu0 0.0
      %410 = vmatprep.subr.mxu0 0.0
      %411 = vmatpush1.msra.mxu0 0.0
      %412 = vmatprep.subr.mxu0 0.0
      %413 = vmatpush1.msra.mxu0 0.0
      %414 = vmatprep.subr.mxu0 0.0
      %415 = vmatpush1.msra.mxu0 0.0
      %416 = vmatprep.subr.mxu0 0.0
      %417 = vmatpush1.msra.mxu0 0.0
      %418 = vmatprep.subr.mxu0 0.0
      %419 = vmatpush1.msra.mxu0 0.0
      %420 = vmatprep.subr.mxu0 0.0
      %421 = vmatpush1.msra.mxu0 0.0
      %422 = vmatprep.subr.mxu0 0.0
      %423 = vmatpush1.msra.mxu0 0.0
      %424 = vmatprep.subr.mxu0 0.0
      %425 = vmatpush1.msra.mxu0 0.0
      %426 = vmatprep.subr.mxu0 0.0
      %427 = vmatpush1.msra.mxu0 0.0
      %428 = vmatprep.subr.mxu0 0.0
      %429 = vmatpush1.msra.mxu0 0.0
      %430 = vmatprep.subr.mxu0 0.0
      %431 = vmatpush1.msra.mxu0 0.0
      %432 = vmatprep.subr.mxu0 0.0
      %433 = vmatpush1.msra.mxu0 0.0
      %434 = vmatprep.subr.mxu0 0.0
      %435 = vmatpush1.msra.mxu0 0.0
      %436 = vmatprep.subr.mxu0 0.0
      %437 = vmatpush1.msra.mxu0 0.0
      %438 = vmatprep.subr.mxu0 0.0
      %439 = vmatpush1.msra.mxu0 0.0
      %440 = vmatprep.subr.mxu0 0.0
      %441 = vmatpush1.msra.mxu0 0.0
      %442 = vmatprep.subr.mxu0 0.0
      %443 = vmatpush1.msra.mxu0 0.0
      %444 = vmatprep.mubr.f32.mxu0 0.0
      %445 = vmatmul.mubr.f32.gmra.mrb[0].mxu0 %v357
      %v446 = vpop.f32.mrb[0].mxu0
      %v447 = vadd.f32 %v354, %v446
      %v448 = vpop.f32.mrb[0].mxu0
      %449 = vmatprep.mubr.f32.mxu0 0.0
      %450 = vmatmul.mubr.f32.gmra.mrb[0].mxu0 %v360
      %v451 = vpop.f32.mrb[0].mxu0
      %v452 = vadd.f32 %v354, %v451
      %v453 = vpop.f32.mrb[0].mxu0
      %454 = vmatprep.mubr.f32.mxu0 0.0
      %455 = vmatmul.mubr.f32.gmra.mrb[0].mxu0 %v363
      %v456 = vpop.f32.mrb[0].mxu0
      %v457 = vadd.f32 %v354, %v456
      %v458 = vpop.f32.mrb[0].mxu0
      %459 = vmatprep.mubr.f32.mxu0 0.0
      %460 = vmatmul.mubr.f32.gmra.mrb[0].mxu0 %v366
      %v461 = vpop.f32.mrb[0].mxu0
      %v462 = vadd.f32 %v354, %v461
      %v463 = vpop.f32.mrb[0].mxu0
      %464 = vmatprep.mubr.f32.mxu0 0.0
      %465 = vmatmul.mubr.f32.gmra.mrb[0].mxu0 %v369
      %v466 = vpop.f32.mrb[0].mxu0
      %v467 = vadd.f32 %v354, %v466
      %v468 = vpop.f32.mrb[0].mxu0
      %469 = vmatprep.mubr.f32.mxu0 0.0
      %470 = vmatmul.mubr.f32.gmra.mrb[0].mxu0 %v372
      %v471 = vpop.f32.mrb[0].mxu0
      %v472 = vadd.f32 %v354, %v471
      %v473 = vpop.f32.mrb[0].mxu0
      %474 = vmatprep.mubr.f32.mxu0 0.0
      %475 = vmatmul.mubr.f32.gmra.mrb[0].mxu0 %v375
      %v476 = vpop.f32.mrb[0].mxu0
      %v477 = vadd.f32 %v354, %v476
      %v478 = vpop.f32.mrb[0].mxu0
      %479 = vmatprep.mubr.f32.mxu0 0.0
      %480 = vmatmul.mubr.f32.gmra.mrb[0].mxu0 %v378
      %v481 = vpop.f32.mrb[0].mxu0
      %v482 = vadd.f32 %v354, %v481
      %v483 = vpop.f32.mrb[0].mxu0
      %484 = vdwg.mxu0
      %v485 = vsub.f32 0.0, %v447
      %v486 = vsub.f32 0.0, %v452
      %v487 = vsub.f32 0.0, %v457
      %v488 = vsub.f32 0.0, %v462
      %v489 = vsub.f32 0.0, %v467
      %v490 = vsub.f32 0.0, %v472
      %v491 = vsub.f32 0.0, %v477
      %v492 = vsub.f32 0.0, %v482
      %v493 = vmul.f32 %v485, 1.442695
      %v494 = vpow.pop %v493
      %v495 = vmul.f32 %v486, 1.442695
      %v496 = vpow.pop %v495
      %v497 = vmul.f32 %v487, 1.442695
      %v498 = vpow.pop %v497
      %v499 = vmul.f32 %v488, 1.442695
      %v500 = vpow.pop %v499
      %v501 = vmul.f32 %v489, 1.442695
      %v502 = vpow.pop %v501
      %v503 = vmul.f32 %v490, 1.442695
      %v504 = vpow.pop %v503
      %v505 = vmul.f32 %v491, 1.442695
      %v506 = vpow.pop %v505
      %v507 = vmul.f32 %v492, 1.442695
      %v508 = vpow.pop %v507
      %v509 = vadd.f32 %v494, 1.0
      %v510 = vadd.f32 %v496, 1.0
      %v511 = vadd.f32 %v498, 1.0
      %v512 = vadd.f32 %v500, 1.0
      %v513 = vadd.f32 %v502, 1.0
      %v514 = vadd.f32 %v504, 1.0
      %v515 = vadd.f32 %v506, 1.0
      %v516 = vadd.f32 %v508, 1.0
      %v517 = vrcp.pop %v509
      %v518 = vrcp.pop %v510
      %v519 = vrcp.pop %v511
      %v520 = vrcp.pop %v512
      %v521 = vrcp.pop %v513
      %v522 = vrcp.pop %v514
      %v523 = vrcp.pop %v515
      %v524 = vrcp.pop %v516
      %v525 = vmul.f32 %v447, %v517
      %v526 = vmul.f32 %v452, %v518
      %v527 = vmul.f32 %v457, %v519
      %v528 = vmul.f32 %v462, %v520
      %v529 = vmul.f32 %v467, %v521
      %v530 = vmul.f32 %v472, %v522
      %v531 = vmul.f32 %v477, %v523
      %v532 = vmul.f32 %v482, %v524
      %v533 = vlaneseq
      %v534 = vshrl.u32 %v533, 7
      %v535 = vsub.s32 1, %v534
      %v536 = vrot.slane %v164, %v535
      %v538 = vsel %vm355, %v525, 0
      %v541 = vsel %vm355, %v526, 0
      %v544 = vsel %vm355, %v527, 0
      %v547 = vsel %vm355, %v528, 0
      %v550 = vsel %vm355, %v529, 0
      %v553 = vsel %vm355, %v530, 0
      %v556 = vsel %vm355, %v531, 0
      %v559 = vsel %vm355, %v532, 0
      %561 = vmatprep.subr.mxu0 0.0
      %562 = vmatpush1.msra.mxu0 %v160
      %563 = vmatprep.subr.mxu0 0.0
      %564 = vmatpush1.msra.mxu0 %v161
      %565 = vmatprep.subr.mxu0 0.0
      %566 = vmatpush1.msra.mxu0 %v162
      %567 = vmatprep.subr.mxu0 0.0
      %568 = vmatpush1.msra.mxu0 %v163
      %569 = vmatprep.subr.mxu0 0.0
      %570 = vmatpush1.msra.mxu0 0.0
      %571 = vmatprep.subr.mxu0 0.0
      %572 = vmatpush1.msra.mxu0 0.0
      %573 = vmatprep.subr.mxu0 0.0
      %574 = vmatpush1.msra.mxu0 0.0
      %575 = vmatprep.subr.mxu0 0.0
      %576 = vmatpush1.msra.mxu0 0.0
      %577 = vmatprep.subr.mxu0 0.0
      %578 = vmatpush1.msra.mxu0 0.0
      %579 = vmatprep.subr.mxu0 0.0
      %580 = vmatpush1.msra.mxu0 0.0
      %581 = vmatprep.subr.mxu0 0.0
      %582 = vmatpush1.msra.mxu0 0.0
      %583 = vmatprep.subr.mxu0 0.0
      %584 = vmatpush1.msra.mxu0 0.0
      %585 = vmatprep.subr.mxu0 0.0
      %586 = vmatpush1.msra.mxu0 0.0
      %587 = vmatprep.subr.mxu0 0.0
      %588 = vmatpush1.msra.mxu0 0.0
      %589 = vmatprep.subr.mxu0 0.0
      %590 = vmatpush1.msra.mxu0 0.0
      %591 = vmatprep.subr.mxu0 0.0
      %592 = vmatpush1.msra.mxu0 0.0
      %593 = vmatprep.subr.mxu0 0.0
      %594 = vmatpush1.msra.mxu0 0.0
      %595 = vmatprep.subr.mxu0 0.0
      %596 = vmatpush1.msra.mxu0 0.0
      %597 = vmatprep.subr.mxu0 0.0
      %598 = vmatpush1.msra.mxu0 0.0
      %599 = vmatprep.subr.mxu0 0.0
      %600 = vmatpush1.msra.mxu0 0.0
      %601 = vmatprep.subr.mxu0 0.0
      %602 = vmatpush1.msra.mxu0 0.0
      %603 = vmatprep.subr.mxu0 0.0
      %604 = vmatpush1.msra.mxu0 0.0
      %605 = vmatprep.subr.mxu0 0.0
      %606 = vmatpush1.msra.mxu0 0.0
      %607 = vmatprep.subr.mxu0 0.0
      %608 = vmatpush1.msra.mxu0 0.0
      %609 = vmatprep.subr.mxu0 0.0
      %610 = vmatpush1.msra.mxu0 0.0
      %611 = vmatprep.subr.mxu0 0.0
      %612 = vmatpush1.msra.mxu0 0.0
      %613 = vmatprep.subr.mxu0 0.0
      %614 = vmatpush1.msra.mxu0 0.0
      %615 = vmatprep.subr.mxu0 0.0
      %616 = vmatpush1.msra.mxu0 0.0
      %617 = vmatprep.subr.mxu0 0.0
      %618 = vmatpush1.msra.mxu0 0.0
      %619 = vmatprep.subr.mxu0 0.0
      %620 = vmatpush1.msra.mxu0 0.0
      %621 = vmatprep.subr.mxu0 0.0
      %622 = vmatpush1.msra.mxu0 0.0
      %623 = vmatprep.subr.mxu0 0.0
      %624 = vmatpush1.msra.mxu0 0.0
      %625 = vmatprep.mubr.f32.mxu0 0.0
      %626 = vmatmul.mubr.f32.gmra.mrb[0].mxu0 %v538
      %v627 = vpop.f32.mrb[0].mxu0
      %v628 = vadd.f32 %v536, %v627
      %v629 = vpop.f32.mrb[0].mxu0
      %630 = vmatprep.mubr.f32.mxu0 0.0
      %631 = vmatmul.mubr.f32.gmra.mrb[0].mxu0 %v541
      %v632 = vpop.f32.mrb[0].mxu0
      %v633 = vadd.f32 %v536, %v632
      %v634 = vpop.f32.mrb[0].mxu0
      %635 = vmatprep.mubr.f32.mxu0 0.0
      %636 = vmatmul.mubr.f32.gmra.mrb[0].mxu0 %v544
      %v637 = vpop.f32.mrb[0].mxu0
      %v638 = vadd.f32 %v536, %v637
      %v639 = vpop.f32.mrb[0].mxu0
      %640 = vmatprep.mubr.f32.mxu0 0.0
      %641 = vmatmul.mubr.f32.gmra.mrb[0].mxu0 %v547
      %v642 = vpop.f32.mrb[0].mxu0
      %v643 = vadd.f32 %v536, %v642
      %v644 = vpop.f32.mrb[0].mxu0
      %645 = vmatprep.mubr.f32.mxu0 0.0
      %646 = vmatmul.mubr.f32.gmra.mrb[0].mxu0 %v550
      %v647 = vpop.f32.mrb[0].mxu0
      %v648 = vadd.f32 %v536, %v647
      %v649 = vpop.f32.mrb[0].mxu0
      %650 = vmatprep.mubr.f32.mxu0 0.0
      %651 = vmatmul.mubr.f32.gmra.mrb[0].mxu0 %v553
      %v652 = vpop.f32.mrb[0].mxu0
      %v653 = vadd.f32 %v536, %v652
      %v654 = vpop.f32.mrb[0].mxu0
      %655 = vmatprep.mubr.f32.mxu0 0.0
      %656 = vmatmul.mubr.f32.gmra.mrb[0].mxu0 %v556
      %v657 = vpop.f32.mrb[0].mxu0
      %v658 = vadd.f32 %v536, %v657
      %v659 = vpop.f32.mrb[0].mxu0
      %660 = vmatprep.mubr.f32.mxu0 0.0
      %661 = vmatmul.mubr.f32.gmra.mrb[0].mxu0 %v559
      %v662 = vpop.f32.mrb[0].mxu0
      %v663 = vadd.f32 %v536, %v662
      %v664 = vpop.f32.mrb[0].mxu0
      %665 = vdwg.mxu0
      %v666 = vsub.f32 0.0, %v628
      %v667 = vsub.f32 0.0, %v633
      %v668 = vsub.f32 0.0, %v638
      %v669 = vsub.f32 0.0, %v643
      %v670 = vsub.f32 0.0, %v648
      %v671 = vsub.f32 0.0, %v653
      %v672 = vsub.f32 0.0, %v658
      %v673 = vsub.f32 0.0, %v663
      %v674 = vmul.f32 %v666, 1.442695
      %v675 = vpow.pop %v674
      %v676 = vmul.f32 %v667, 1.442695
      %v677 = vpow.pop %v676
      %v678 = vmul.f32 %v668, 1.442695
      %v679 = vpow.pop %v678
      %v680 = vmul.f32 %v669, 1.442695
      %v681 = vpow.pop %v680
      %v682 = vmul.f32 %v670, 1.442695
      %v683 = vpow.pop %v682
      %v684 = vmul.f32 %v671, 1.442695
      %v685 = vpow.pop %v684
      %v686 = vmul.f32 %v672, 1.442695
      %v687 = vpow.pop %v686
      %v688 = vmul.f32 %v673, 1.442695
      %v689 = vpow.pop %v688
      %v690 = vadd.f32 %v675, 1.0
      %v691 = vadd.f32 %v677, 1.0
      %v692 = vadd.f32 %v679, 1.0
      %v693 = vadd.f32 %v681, 1.0
      %v694 = vadd.f32 %v683, 1.0
      %v695 = vadd.f32 %v685, 1.0
      %v696 = vadd.f32 %v687, 1.0
      %v697 = vadd.f32 %v689, 1.0
      %v698 = vrcp.pop %v690
      %v699 = vrcp.pop %v691
      %v700 = vrcp.pop %v692
      %v701 = vrcp.pop %v693
      %v702 = vrcp.pop %v694
      %v703 = vrcp.pop %v695
      %v704 = vrcp.pop %v696
      %v705 = vrcp.pop %v697
      %v706 = vmul.f32 %v628, %v698
      %v707 = vmul.f32 %v633, %v699
      %v708 = vmul.f32 %v638, %v700
      %v709 = vmul.f32 %v643, %v701
      %v710 = vmul.f32 %v648, %v702
      %v711 = vmul.f32 %v653, %v703
      %v712 = vmul.f32 %v658, %v704
      %v713 = vmul.f32 %v663, %v705
      %vm714 = vcmask 260102
      %v715 = vsel %vm714, %v155, 0.0
      %716 = vadd.xlane.f32.xlu0 %v715
      %v717 = vpop.xlane.xlu0 %716
      %v718 = vlaneseq
      %v719 = vshrl.u32 %v718, 7
      %v720 = vsub.s32 5, %v719
      %v721 = vrot.slane %v155, %v720
      %v722 = vmul.f32 %v706, %v721
      %v723 = vmul.f32 %v707, %v721
      %v724 = vmul.f32 %v708, %v721
      %v725 = vmul.f32 %v709, %v721
      %v726 = vmul.f32 %v710, %v721
      %v727 = vmul.f32 %v711, %v721
      %v728 = vmul.f32 %v712, %v721
      %v729 = vmul.f32 %v713, %v721
      %v730 = vsel %vm355, %v722, 0.0
      %731 = vadd.xlane.f32.xlu0 %v730
      %v732 = vpop.xlane.xlu0 %731
      %v733 = vsel %vm355, %v723, 0.0
      %734 = vadd.xlane.f32.xlu0 %v733
      %v735 = vpop.xlane.xlu0 %734
      %v736 = vsel %vm355, %v724, 0.0
      %737 = vadd.xlane.f32.xlu0 %v736
      %v738 = vpop.xlane.xlu0 %737
      %v739 = vsel %vm355, %v725, 0.0
      %740 = vadd.xlane.f32.xlu0 %v739
      %v741 = vpop.xlane.xlu0 %740
      %v742 = vsel %vm355, %v726, 0.0
      %743 = vadd.xlane.f32.xlu0 %v742
      %v744 = vpop.xlane.xlu0 %743
      %v745 = vsel %vm355, %v727, 0.0
      %746 = vadd.xlane.f32.xlu0 %v745
      %v747 = vpop.xlane.xlu0 %746
      %v748 = vsel %vm355, %v728, 0.0
      %749 = vadd.xlane.f32.xlu0 %v748
      %v750 = vpop.xlane.xlu0 %749
      %v751 = vsel %vm355, %v729, 0.0
      %752 = vadd.xlane.f32.xlu0 %v751
      %v753 = vpop.xlane.xlu0 %752
      %v754 = vlaneseq
      %v755 = vshrl.u32 %v754, 7
      %v756 = vsub.s32 6, %v755
      %v757 = vrot.slane %v717, %v756
      %v758 = vadd.f32 %v732, %v757
      %v759 = vadd.f32 %v735, %v757
      %v760 = vadd.f32 %v738, %v757
      %v761 = vadd.f32 %v741, %v757
      %v762 = vadd.f32 %v744, %v757
      %v763 = vadd.f32 %v747, %v757
      %v764 = vadd.f32 %v750, %v757
      %v765 = vadd.f32 %v753, %v757
      %v766 = vmax.f32 %v758, -2.0
      %v767 = vmax.f32 %v759, -2.0
      %v768 = vmax.f32 %v760, -2.0
      %v769 = vmax.f32 %v761, -2.0
      %v770 = vmax.f32 %v762, -2.0
      %v771 = vmax.f32 %v763, -2.0
      %v772 = vmax.f32 %v764, -2.0
      %v773 = vmax.f32 %v765, -2.0
      %v774 = vmin.f32 %v766, 2.0
      %v775 = vmin.f32 %v767, 2.0
      %v776 = vmin.f32 %v768, 2.0
      %v777 = vmin.f32 %v769, 2.0
      %v778 = vmin.f32 %v770, 2.0
      %v779 = vmin.f32 %v771, 2.0
      %v780 = vmin.f32 %v772, 2.0
      %v781 = vmin.f32 %v773, 2.0
      %vm782 = vcmask 7168
      %783 = vst.msk [vmem:[%s145] sm:$0xff] %vm782, %v774
      %784 = vst.msk [vmem:[%s145 + $0x8] sm:$0xff] %vm782, %v775
      %785 = vst.msk [vmem:[%s145 + $0x10] sm:$0xff] %vm782, %v776
      %786 = vst.msk [vmem:[%s145 + $0x18] sm:$0xff] %vm782, %v777
      %787 = vst.msk [vmem:[%s145 + $0x20] sm:$0xff] %vm782, %v778
      %788 = vst.msk [vmem:[%s145 + $0x28] sm:$0xff] %vm782, %v779
      %789 = vst.msk [vmem:[%s145 + $0x30] sm:$0xff] %vm782, %v780
      %790 = vst.msk [vmem:[%s145 + $0x38] sm:$0xff] %vm782, %v781
      %s791 = smul.u32 8, %s13
      %p792 = scmp.lt.s32.totalorder %s791, 15
      %s793 = scalar_select %p792, %s791, 15
      %s794 = smul.addr %s793, 8
      %s795 = scalar_lea.vmem %s2, %s794
      // Predicated region
      $region29: #{tpu_custom_call.1} parent=27 // pred_check
        %p796 = pneg %p78
      $region30: #{tpu_custom_call.1} parent=27 // pred_check_branch
        %798 = sbr.rel (%p796) target = $region32
      $region31: #{tpu_custom_call.1} parent=27 // pred_region
        %s799 = smul.u32 8, %s13
      $region32: #{tpu_custom_call.1} parent=27 // pred_fallthru
        _
    $region28: #{tpu_custom_call.1} parent=5 // pred_fallthru
      _
    %p800 = scmp.le.s32.totalorder 2, %s8
    // Predicated region
    $region33: #{tpu_custom_call.1} parent=5 // pred_check
      %p801 = pneg %p800
    $region34: #{tpu_custom_call.1} parent=5 // pred_check_branch
      %803 = sbr.rel (%p801) target = $region36
    $region35: #{tpu_custom_call.1} parent=5 // pred_region
      %s804 = ssub.s32 %s8, 2
      // Predicated region
      $region37: #{tpu_custom_call.1} parent=35 // pred_check
        %p805 = pneg %p84
      $region38: #{tpu_custom_call.1} parent=35 // pred_check_branch
        %807 = sbr.rel (%p805) target = $region40
      $region39: #{tpu_custom_call.1} parent=35 // pred_region
        %s808 = smul.u32 8, %s14
        %p809 = scmp.lt.s32.totalorder %s808, 15
        %s810 = scalar_select %p809, %s808, 15
        %s811 = smul.addr %s810, 8
        %s812 = scalar_lea.vmem %s2, %s811
      $region40: #{tpu_custom_call.1} parent=35 // pred_fallthru
        _
    $region36: #{tpu_custom_call.1} parent=5 // pred_fallthru
      _
  $region6: #{tpu_custom_call.1} parent=0 // loop_footer
    %s12 = sadd.s32 1, %s8
  $region7: #{tpu_custom_call.1} parent=0 // loop_footer_branch
    %7 = sbr.rel target = $region3
  $region8: #{tpu_custom_call.1} parent=0 // loop_exit
    _

</llo_original>
